<compile_context>
chip_gen: v7x
topology: tpu7x:2x2x1
jax: 0.10.0
libtpu: 0.0.40
codegen_flags: <defaults>
</compile_context>

<pallas_src>
import math

import jax
import jax.numpy as jnp
from jax.experimental import pallas as pl
from jax.experimental.pallas import tpu as pltpu


def _round_up(x: int, m: int) -> int:
    return ((x + m - 1) // m) * m


def vehicle_encoder_kernel(x_ref, w1_ref, b1_ref, w2_ref, b2_ref, o_ref):
    # fc1: bf16 MXU operands, f32 accumulation; epilogue (bias + ReLU) in f32.
    h = jnp.dot(x_ref[...], w1_ref[...], preferred_element_type=jnp.float32)
    h = jnp.maximum(h + b1_ref[...], 0.0)
    # fc2: cast activation to bf16 for the MXU only, accumulate in f32.
    y = jnp.dot(h.astype(jnp.bfloat16), w2_ref[...],
                preferred_element_type=jnp.float32)
    y = jnp.maximum(y + b2_ref[...], 0.0)
    o_ref[...] = y.astype(o_ref.dtype)


def vehicle_encoder(vehicle_states, w1, b1, w2, b2, *, tm_groups=256):
    """Fused two-layer MLP encoder (ReLU(ReLU(x @ W1 + b1) @ W2 + b2)).

    vehicle_states: (..., input_dim) float32
    w1: (input_dim, hidden_dim), b1: (hidden_dim,)
    w2: (hidden_dim, hidden_dim), b2: (hidden_dim,)
    returns: (..., hidden_dim) float32
    """
    orig_shape = vehicle_states.shape
    input_dim, hidden_dim = w1.shape

    x = vehicle_states.reshape(-1, input_dim).astype(jnp.float32)
    n = x.shape[0]

    # --- lane-dense row grouping -------------------------------------------
    # Group G rows per lane-dense row so the output tile width (G*hidden_dim)
    # is a multiple of 128 -> unmasked stores.  (n, hidden) row-major is
    # bit-identical to (n/G, G*hidden), so the wrapper reshape is free.
    g = 128 // math.gcd(hidden_dim, 128)
    gin = g * input_dim
    gout = g * hidden_dim

    # Block-diagonal weights keep grouped rows independent: kron(I_G, W).
    eye_g = jnp.eye(g, dtype=jnp.float32)
    w1_blk = jnp.kron(eye_g, w1.astype(jnp.float32)).astype(jnp.bfloat16)
    w2_blk = jnp.kron(eye_g, w2.astype(jnp.float32)).astype(jnp.bfloat16)
    b1_blk = jnp.tile(b1.astype(jnp.float32), g).reshape(1, gout)
    b2_blk = jnp.tile(b2.astype(jnp.float32), g).reshape(1, gout)

    # --- batch tiling --------------------------------------------------------
    m_g = pl.cdiv(n, g)                                  # grouped rows
    tm_g = min(tm_groups, _round_up(max(m_g, 1), 8))      # grouped rows / tile
    m_pad_g = _round_up(m_g, tm_g)
    n_pad = m_pad_g * g
    if n_pad != n:
        x = jnp.pad(x, ((0, n_pad - n), (0, 0)))
    xg = x.reshape(m_pad_g, gin).astype(jnp.bfloat16)      # bf16 HBM traffic

    grid = (m_pad_g // tm_g,)

    # --- VMEM budget (double-buffered tiles + resident weights) -------------
    x_tile_bytes = tm_g * gin * 2
    o_tile_bytes = tm_g * gout * 4
    w_bytes = (gin * gout + gout * gout) * 2 + 2 * gout * 4
    vmem_needed = 2 * (x_tile_bytes + o_tile_bytes) + 2 * w_bytes
    vmem_limit = int(min(max(4 * vmem_needed, 8 << 20), 48 << 20))

    cost = pl.CostEstimate(
        flops=2 * n * hidden_dim * (input_dim + hidden_dim),
        transcendentals=0,
        bytes_accessed=(n_pad * input_dim * 2        # x (bf16)
                        + n_pad * hidden_dim * 4     # out (f32)
                        + (gin * gout + gout * gout) * 2
                        + 2 * gout * 4),
    )

    out = pl.pallas_call(
        vehicle_encoder_kernel,
        out_shape=jax.ShapeDtypeStruct((m_pad_g, gout), jnp.float32),
        grid_spec=pltpu.PrefetchScalarGridSpec(
            num_scalar_prefetch=0,
            grid=grid,
            in_specs=[
                pl.BlockSpec((tm_g, gin), lambda i: (i, 0)),    # x tile
                pl.BlockSpec((gin, gout), lambda i: (0, 0)),    # W1 (resident)
                pl.BlockSpec((1, gout), lambda i: (0, 0)),      # b1 (resident)
                pl.BlockSpec((gout, gout), lambda i: (0, 0)),   # W2 (resident)
                pl.BlockSpec((1, gout), lambda i: (0, 0)),      # b2 (resident)
            ],
            out_specs=pl.BlockSpec((tm_g, gout), lambda i: (i, 0)),
        ),
        compiler_params=pltpu.CompilerParams(
            dimension_semantics=("parallel",),
            vmem_limit_bytes=vmem_limit,
        ),
        cost_estimate=cost,
    )(xg, w1_blk, b1_blk, w2_blk, b2_blk)

    out = out.reshape(n_pad, hidden_dim)[:n]
    return out.reshape(*orig_shape[:-1], hidden_dim)


def init_params(key, input_dim, hidden_dim):
    """Deterministic init matching torch.nn.Linear (uniform +/- 1/sqrt(fan_in))."""
    k1, k2, k3, k4 = jax.random.split(key, 4)
    bound1 = 1.0 / jnp.sqrt(input_dim)
    bound2 = 1.0 / jnp.sqrt(hidden_dim)
    w1 = jax.random.uniform(k1, (input_dim, hidden_dim), jnp.float32, -bound1, bound1)
    b1 = jax.random.uniform(k2, (hidden_dim,), jnp.float32, -bound1, bound1)
    w2 = jax.random.uniform(k3, (hidden_dim, hidden_dim), jnp.float32, -bound2, bound2)
    b2 = jax.random.uniform(k4, (hidden_dim,), jnp.float32, -bound2, bound2)
    return w1, b1, w2, b2


if __name__ == "__main__":
    key = jax.random.PRNGKey(0)
    kx, kp = jax.random.split(key)

    batch, input_dim, hidden_dim = 8, 16, 32
    vehicle_states = jax.random.normal(kx, (batch, input_dim), jnp.float32)
    w1, b1, w2, b2 = init_params(kp, input_dim, hidden_dim)

    out = vehicle_encoder(vehicle_states, w1, b1, w2, b2)
    out = jax.block_until_ready(out)
    assert out.shape == (batch, hidden_dim)

    # Reference #1: exactly mirrors the kernel's bf16-operand / f32-accumulate math.
    xb = vehicle_states.astype(jnp.bfloat16).astype(jnp.float32)
    w1b = w1.astype(jnp.bfloat16).astype(jnp.float32)
    w2b = w2.astype(jnp.bfloat16).astype(jnp.float32)
    h_ref = jnp.maximum(xb @ w1b + b1, 0.0)
    ref_bf16_path = jnp.maximum(
        h_ref.astype(jnp.bfloat16).astype(jnp.float32) @ w2b + b2, 0.0)
    assert jnp.allclose(out, ref_bf16_path, atol=2e-3, rtol=2e-3)

    # Reference #2: pure f32 PyTorch-equivalent forward; tolerance deliberately
    # loosened to cover bf16 input rounding (accumulation is still f32).
    ref_f32 = jnp.maximum(jnp.maximum(vehicle_states @ w1 + b1, 0.0) @ w2 + b2, 0.0)
    assert jnp.allclose(out, ref_f32, atol=6e-2, rtol=6e-2)

    print("KERNEL_OK")
</pallas_src>

<mosaic_0001>
module attributes {stable_mosaic.version = 11 : i64} {
  func.func @vehicle_encoder_kernel(%arg0: i32, %arg1: memref<8x64xbf16, #tpu.memory_space<vmem>>, %arg2: memref<64x128xbf16, #tpu.memory_space<vmem>>, %arg3: memref<1x128xf32, #tpu.memory_space<vmem>>, %arg4: memref<128x128xbf16, #tpu.memory_space<vmem>>, %arg5: memref<1x128xf32, #tpu.memory_space<vmem>>, %arg6: memref<8x128xf32, #tpu.memory_space<vmem>>) attributes {dimension_semantics = [#tpu.dimension_semantics<parallel>], iteration_bounds = array<i64: 1>, scalar_prefetch = 0 : i64, scratch_operands = 0 : i64, tpu.core_type = #tpu.core_type<tc>, window_params = [{transform_indices = @transform_0, window_bounds = array<i64: 8, 64>}, {pipeline_mode = #tpu.pipeline_mode<synchronous>, transform_indices = @transform_1, window_bounds = array<i64: 64, 128>}, {pipeline_mode = #tpu.pipeline_mode<synchronous>, transform_indices = @transform_2, window_bounds = array<i64: 1, 128>}, {pipeline_mode = #tpu.pipeline_mode<synchronous>, transform_indices = @transform_3, window_bounds = array<i64: 128, 128>}, {pipeline_mode = #tpu.pipeline_mode<synchronous>, transform_indices = @transform_4, window_bounds = array<i64: 1, 128>}, {transform_indices = @transform_5, window_bounds = array<i64: 8, 128>}]} {
    %c0 = arith.constant 0 : index
    %c0_0 = arith.constant 0 : index
    %0 = vector.load %arg1[%c0, %c0_0] : memref<8x64xbf16, #tpu.memory_space<vmem>>, vector<8x64xbf16>
    %c0_1 = arith.constant 0 : index
    %c0_2 = arith.constant 0 : index
    %1 = vector.load %arg2[%c0_1, %c0_2] : memref<64x128xbf16, #tpu.memory_space<vmem>>, vector<64x128xbf16>
    %cst = arith.constant dense<0.000000e+00> : vector<8x128xf32>
    %2 = tpu.matmul %0, %1, %cst {dimension_numbers = #tpu.dot_dimension_numbers<[1], [0], [0], [1], [0, 0, 1, 1], [], []>} : vector<8x64xbf16>, vector<64x128xbf16>, vector<8x128xf32> -> vector<8x128xf32>
    %c0_3 = arith.constant 0 : index
    %c0_4 = arith.constant 0 : index
    %3 = vector.load %arg3[%c0_3, %c0_4] : memref<1x128xf32, #tpu.memory_space<vmem>>, vector<1x128xf32>
    %4 = vector.broadcast %3 : vector<1x128xf32> to vector<8x128xf32>
    %5 = arith.addf %2, %4 : vector<8x128xf32>
    %cst_5 = arith.constant 0.000000e+00 : f32
    %6 = vector.broadcast %cst_5 : f32 to vector<8x128xf32>
    %7 = arith.maximumf %5, %6 : vector<8x128xf32>
    %8 = arith.truncf %7 : vector<8x128xf32> to vector<8x128xbf16>
    %c0_6 = arith.constant 0 : index
    %c0_7 = arith.constant 0 : index
    %9 = vector.load %arg4[%c0_6, %c0_7] : memref<128x128xbf16, #tpu.memory_space<vmem>>, vector<128x128xbf16>
    %cst_8 = arith.constant dense<0.000000e+00> : vector<8x128xf32>
    %10 = tpu.matmul %8, %9, %cst_8 {dimension_numbers = #tpu.dot_dimension_numbers<[1], [0], [0], [1], [0, 0, 1, 1], [], []>} : vector<8x128xbf16>, vector<128x128xbf16>, vector<8x128xf32> -> vector<8x128xf32>
    %c0_9 = arith.constant 0 : index
    %c0_10 = arith.constant 0 : index
    %11 = vector.load %arg5[%c0_9, %c0_10] : memref<1x128xf32, #tpu.memory_space<vmem>>, vector<1x128xf32>
    %12 = vector.broadcast %11 : vector<1x128xf32> to vector<8x128xf32>
    %13 = arith.addf %10, %12 : vector<8x128xf32>
    %cst_11 = arith.constant 0.000000e+00 : f32
    %14 = vector.broadcast %cst_11 : f32 to vector<8x128xf32>
    %15 = arith.maximumf %13, %14 : vector<8x128xf32>
    %c0_12 = arith.constant 0 : index
    %c0_13 = arith.constant 0 : index
    %16 = vector.load %arg6[%c0_12, %c0_13] : memref<8x128xf32, #tpu.memory_space<vmem>>, vector<8x128xf32>
    tpu.vector_store %arg6[%c0_12, %c0_13], %15 {strides = array<i32>} : memref<8x128xf32, #tpu.memory_space<vmem>>, vector<8x128xf32>,
    return
  }
  func.func @transform_0(%arg0: i32) -> (i32, i32) {
    %c0_i32 = arith.constant 0 : i32
    %c0_i32_0 = arith.constant 0 : i32
    return %arg0, %c0_i32 : i32, i32
  }
  func.func @transform_1(%arg0: i32) -> (i32, i32) {
    %c0_i32 = arith.constant 0 : i32
    %c0_i32_0 = arith.constant 0 : i32
    %c0_i32_1 = arith.constant 0 : i32
    return %c0_i32, %c0_i32_0 : i32, i32
  }
  func.func @transform_2(%arg0: i32) -> (i32, i32) {
    %c0_i32 = arith.constant 0 : i32
    %c0_i32_0 = arith.constant 0 : i32
    %c0_i32_1 = arith.constant 0 : i32
    return %c0_i32, %c0_i32_0 : i32, i32
  }
  func.func @transform_3(%arg0: i32) -> (i32, i32) {
    %c0_i32 = arith.constant 0 : i32
    %c0_i32_0 = arith.constant 0 : i32
    %c0_i32_1 = arith.constant 0 : i32
    return %c0_i32, %c0_i32_0 : i32, i32
  }
  func.func @transform_4(%arg0: i32) -> (i32, i32) {
    %c0_i32 = arith.constant 0 : i32
    %c0_i32_0 = arith.constant 0 : i32
    %c0_i32_1 = arith.constant 0 : i32
    return %c0_i32, %c0_i32_0 : i32, i32
  }
  func.func @transform_5(%arg0: i32) -> (i32, i32) {
    %c0_i32 = arith.constant 0 : i32
    %c0_i32_0 = arith.constant 0 : i32
    return %arg0, %c0_i32 : i32, i32
  }
}

</mosaic_0001>

<llo_original>
// kernel: tpu_custom_call.1
$region0: #{tpu_custom_call.1}
  #allocation0 [shape = 'u32[]', space=smem, size = 0x4, offset = 0x4, fixed_abs, tag = 'smem constant byte address 0x4 - core index']
  #allocation1 [shape = 'u32[144,128]{1,0:T(1,128)}', space=vmem, size = 0x12000, scoped, tag = 'internal scratch']
  %s0 = inlined_call_operand.hbm [shape: bf16[8,64], index: 0, kind: input, shape index: {}]
  %s1 = inlined_call_operand.hbm [shape: bf16[64,128], index: 1, kind: input, shape index: {}]
  %s2 = inlined_call_operand.vmem [shape: f32[1,128], index: 2, kind: input, shape index: {}]
  %s3 = inlined_call_operand.hbm [shape: bf16[128,128], index: 3, kind: input, shape index: {}]
  %s4 = inlined_call_operand.vmem [shape: f32[1,128], index: 4, kind: input, shape index: {}]
  %s5 = inlined_call_operand.hbm [shape: f32[8,128], index: 5, kind: output, shape index: {}]
  %s6 = sld [smem:[#allocation0]]
  $region42: #{tpu_custom_call.1} parent=0
    _
  %s8 = ssub.s32 1, %s6
  %s9 = scalar_select 0, %s8, %s6
  $region1: #{tpu_custom_call.1} parent=0
    #allocation2 [shape = 'u8[2048]{0}', space=vmem, size = 0x800, scoped, tag = 'input window, operand 0, single buffered']
    #allocation3 [shape = 's32[1]{0}', space=sflag, size = 0x4, scoped, tag = 'scoped memory for tpu_custom_call.1']
    #allocation4 [shape = 's32[1]{0}', space=sflag, size = 0x4, scoped, tag = 'scoped memory for tpu_custom_call.1']
    #allocation5 [shape = 'u8[16384]{0}', space=vmem, size = 0x4000, scoped, tag = 'input window, operand 1, single buffered']
    #allocation6 [shape = 's32[1]{0}', space=sflag, size = 0x4, scoped, tag = 'scoped memory for tpu_custom_call.1']
    #allocation7 [shape = 'u8[32768]{0}', space=vmem, size = 0x8000, scoped, tag = 'input window, operand 3, single buffered']
    #allocation8 [shape = 'u8[4096]{0}', space=vmem, size = 0x1000, scoped, tag = 'output window, operand 0, single buffered']
    %10 = vsyncpa [#allocation3], 0
    %11 = vsyncpa [#allocation6], 0
    %12 = vsyncpa [#allocation4], 0
    // Predicated region
    $region2: #{tpu_custom_call.1} parent=1 // pred_check
      _
    $region3: #{tpu_custom_call.1} parent=1 // pred_check_branch
      %14 = sbr.rel (0) target = $region5
    $region4: #{tpu_custom_call.1} parent=1 // pred_region
      %s16 = ssub.s32 64, 64
      %17 = vsyncadd [#allocation3], %s16
      %s19 = sshll.u32 [#allocation2], 4
      %s20 = int_to_ptr.vmem [resolvable:$true] %s19
      %22 = dma.hbm_to_vmem [thread:$0]  %s0, 64, %s20, [#allocation3]
    $region5: #{tpu_custom_call.1} parent=1 // pred_fallthru
      _
    // Predicated region
    $region6: #{tpu_custom_call.1} parent=1 // pred_check
      _
    $region7: #{tpu_custom_call.1} parent=1 // pred_check_branch
      %24 = sbr.rel (0) target = $region9
    $region8: #{tpu_custom_call.1} parent=1 // pred_region
      %s26 = ssub.s32 512, 512
      %27 = vsyncadd [#allocation6], %s26
      %s28 = sshll.u32 [#allocation5], 4
      %s29 = int_to_ptr.vmem [resolvable:$true] %s28
      %34 = dma.hbm_to_vmem [thread:$0]  %s1, 512, %s29, [#allocation6], 64, 64, 4
    $region9: #{tpu_custom_call.1} parent=1 // pred_fallthru
      _
    // Predicated region
    $region10: #{tpu_custom_call.1} parent=1 // pred_check
      _
    $region11: #{tpu_custom_call.1} parent=1 // pred_check_branch
      %36 = sbr.rel (0) target = $region13
    $region12: #{tpu_custom_call.1} parent=1 // pred_region
      _
    $region13: #{tpu_custom_call.1} parent=1 // pred_fallthru
      _
    // Predicated region
    $region14: #{tpu_custom_call.1} parent=1 // pred_check
      _
    $region15: #{tpu_custom_call.1} parent=1 // pred_check_branch
      %38 = sbr.rel (0) target = $region17
    $region16: #{tpu_custom_call.1} parent=1 // pred_region
      %s40 = ssub.s32 1024, 1024
      %41 = vsyncadd [#allocation6], %s40
      %s42 = sshll.u32 [#allocation7], 4
      %s43 = int_to_ptr.vmem [resolvable:$true] %s42
      %48 = dma.hbm_to_vmem [thread:$0]  %s3, 1024, %s43, [#allocation6], 64, 64, 4
    $region17: #{tpu_custom_call.1} parent=1 // pred_fallthru
      _
    // Predicated region
    $region18: #{tpu_custom_call.1} parent=1 // pred_check
      _
    $region19: #{tpu_custom_call.1} parent=1 // pred_check_branch
      %50 = sbr.rel (0) target = $region21
    $region20: #{tpu_custom_call.1} parent=1 // pred_region
      _
    $region21: #{tpu_custom_call.1} parent=1 // pred_fallthru
      _
    // Predicated region
    $region22: #{tpu_custom_call.1} parent=1 // pred_check
      _
    $region23: #{tpu_custom_call.1} parent=1 // pred_check_branch
      %52 = sbr.rel (0) target = $region25
    $region24: #{tpu_custom_call.1} parent=1 // pred_region
      %53 = dma.done [#allocation3], 64
    $region25: #{tpu_custom_call.1} parent=1 // pred_fallthru
      _
    // Predicated region
    $region26: #{tpu_custom_call.1} parent=1 // pred_check
      _
    $region27: #{tpu_custom_call.1} parent=1 // pred_check_branch
      %55 = sbr.rel (0) target = $region29
    $region28: #{tpu_custom_call.1} parent=1 // pred_region
      %56 = dma.done [#allocation6], 512
    $region29: #{tpu_custom_call.1} parent=1 // pred_fallthru
      _
    // Predicated region
    $region30: #{tpu_custom_call.1} parent=1 // pred_check
      _
    $region31: #{tpu_custom_call.1} parent=1 // pred_check_branch
      %58 = sbr.rel (0) target = $region33
    $region32: #{tpu_custom_call.1} parent=1 // pred_region
      %59 = dma.done [#allocation6], 1024
    $region33: #{tpu_custom_call.1} parent=1 // pred_fallthru
      _
    %v61 = vld [vmem:[#allocation2] sm:$0xf]
    %v62 = vld [vmem:[#allocation5] sm:$0xf]
    %v63 = vld [vmem:[#allocation5 + $0x4] sm:$0xf]
    %v64 = vld [vmem:[#allocation5 + $0x8] sm:$0xf]
    %v65 = vld [vmem:[#allocation5 + $0xc] sm:$0xf]
    %v66 = vld [vmem:[#allocation5 + $0x10] sm:$0xf]
    %v67 = vld [vmem:[#allocation5 + $0x14] sm:$0xf]
    %v68 = vld [vmem:[#allocation5 + $0x18] sm:$0xf]
    %v69 = vld [vmem:[#allocation5 + $0x1c] sm:$0xf]
    %v70 = vld [vmem:[%s2] sm:$0x1]
    %v72 = vlaneseq
    %v73 = vshrl.u32 %v72, 7
    %v74 = vsub.s32 0, %v73
    %v75 = vrot.slane %v70, %v74
    %v85 = vunpack.c.l.b16 %v62
    %v86 = vunpack.c.l.b16 %v63
    %v87 = vunpack.c.l.b16 %v64
    %v88 = vunpack.c.l.b16 %v65
    %v89 = vunpack.c.l.b16 %v66
    %v90 = vunpack.c.l.b16 %v67
    %v91 = vunpack.c.l.b16 %v68
    %v92 = vunpack.c.l.b16 %v69
    %v93 = vpack.c.b16 %v86, %v85
    %v94 = vpack.c.b16 %v88, %v87
    %v95 = vpack.c.b16 %v90, %v89
    %v96 = vpack.c.b16 %v92, %v91
    %vm101 = vcmask 523264
    %v103 = vsel %vm101, %v61, 0
    %105 = vmatprep.subr.bf16.mxu0 0
    %106 = vmatpush1.bf16.msra.mxu0 %v93
    %107 = vmatprep.subr.bf16.mxu0 0
    %108 = vmatpush1.bf16.msra.mxu0 %v94
    %109 = vmatprep.subr.bf16.mxu0 0
    %110 = vmatpush1.bf16.msra.mxu0 %v95
    %111 = vmatprep.subr.bf16.mxu0 0
    %112 = vmatpush1.bf16.msra.mxu0 %v96
    %113 = vmatprep.subr.bf16.mxu0 0
    %114 = vmatpush1.bf16.msra.mxu0 0
    %115 = vmatprep.subr.bf16.mxu0 0
    %116 = vmatpush1.bf16.msra.mxu0 0
    %117 = vmatprep.subr.bf16.mxu0 0
    %118 = vmatpush1.bf16.msra.mxu0 0
    %119 = vmatprep.subr.bf16.mxu0 0
    %120 = vmatpush1.bf16.msra.mxu0 0
    %121 = vmatprep.subr.bf16.mxu0 0
    %122 = vmatpush1.bf16.msra.mxu0 0
    %123 = vmatprep.subr.bf16.mxu0 0
    %124 = vmatpush1.bf16.msra.mxu0 0
    %125 = vmatprep.subr.bf16.mxu0 0
    %126 = vmatpush1.bf16.msra.mxu0 0
    %127 = vmatprep.subr.bf16.mxu0 0
    %128 = vmatpush1.bf16.msra.mxu0 0
    %129 = vmatprep.subr.bf16.mxu0 0
    %130 = vmatpush1.bf16.msra.mxu0 0
    %131 = vmatprep.subr.bf16.mxu0 0
    %132 = vmatpush1.bf16.msra.mxu0 0
    %133 = vmatprep.subr.bf16.mxu0 0
    %134 = vmatpush1.bf16.msra.mxu0 0
    %135 = vmatprep.subr.bf16.mxu0 0
    %136 = vmatpush1.bf16.msra.mxu0 0
    %137 = vmatprep.mubr.bf16.mxu0 0
    %138 = vmatmul.mubr.bf16.gmra.mrb[0].mxu0 %v103
    %v139 = vpop.f32.mrb[0].mxu0
    %v140 = vadd.f32 %v75, %v139
    %v141 = vpop.f32.mrb[0].mxu0
    %v142 = vpop.f32.mrb[0].mxu0
    %v143 = vpop.f32.mrb[0].mxu0
    %144 = vdwg.mxu0
    %v145 = vmax.f32 %v140, 0.0
    %v146 = vpack.c.bf16 %v145, %v145
    %v147 = vld [vmem:[#allocation7] sm:$0xf]
    %v148 = vld [vmem:[#allocation7 + $0x4] sm:$0xf]
    %v149 = vld [vmem:[#allocation7 + $0x8] sm:$0xf]
    %v150 = vld [vmem:[#allocation7 + $0xc] sm:$0xf]
    %v151 = vld [vmem:[#allocation7 + $0x10] sm:$0xf]
    %v152 = vld [vmem:[#allocation7 + $0x14] sm:$0xf]
    %v153 = vld [vmem:[#allocation7 + $0x18] sm:$0xf]
    %v154 = vld [vmem:[#allocation7 + $0x1c] sm:$0xf]
    %v155 = vld [vmem:[#allocation7 + $0x20] sm:$0xf]
    %v156 = vld [vmem:[#allocation7 + $0x24] sm:$0xf]
    %v157 = vld [vmem:[#allocation7 + $0x28] sm:$0xf]
    %v158 = vld [vmem:[#allocation7 + $0x2c] sm:$0xf]
    %v159 = vld [vmem:[#allocation7 + $0x30] sm:$0xf]
    %v160 = vld [vmem:[#allocation7 + $0x34] sm:$0xf]
    %v161 = vld [vmem:[#allocation7 + $0x38] sm:$0xf]
    %v162 = vld [vmem:[#allocation7 + $0x3c] sm:$0xf]
    %v163 = vld [vmem:[%s4] sm:$0x1]
    %v165 = vlaneseq
    %v166 = vshrl.u32 %v165, 7
    %v167 = vsub.s32 0, %v166
    %v168 = vrot.slane %v163, %v167
    %v186 = vunpack.c.l.b16 %v147
    %v187 = vunpack.c.l.b16 %v148
    %v188 = vunpack.c.l.b16 %v149
    %v189 = vunpack.c.l.b16 %v150
    %v190 = vunpack.c.l.b16 %v151
    %v191 = vunpack.c.l.b16 %v152
    %v192 = vunpack.c.l.b16 %v153
    %v193 = vunpack.c.l.b16 %v154
    %v194 = vunpack.c.l.b16 %v155
    %v195 = vunpack.c.l.b16 %v156
    %v196 = vunpack.c.l.b16 %v157
    %v197 = vunpack.c.l.b16 %v158
    %v198 = vunpack.c.l.b16 %v159
    %v199 = vunpack.c.l.b16 %v160
    %v200 = vunpack.c.l.b16 %v161
    %v201 = vunpack.c.l.b16 %v162
    %v202 = vpack.c.b16 %v187, %v186
    %v203 = vpack.c.b16 %v189, %v188
    %v204 = vpack.c.b16 %v191, %v190
    %v205 = vpack.c.b16 %v193, %v192
    %v206 = vpack.c.b16 %v195, %v194
    %v207 = vpack.c.b16 %v197, %v196
    %v208 = vpack.c.b16 %v199, %v198
    %v209 = vpack.c.b16 %v201, %v200
    %218 = vmatprep.subr.bf16.mxu0 0
    %219 = vmatpush1.bf16.msra.mxu0 %v202
    %220 = vmatprep.subr.bf16.mxu0 0
    %221 = vmatpush1.bf16.msra.mxu0 %v203
    %222 = vmatprep.subr.bf16.mxu0 0
    %223 = vmatpush1.bf16.msra.mxu0 %v204
    %224 = vmatprep.subr.bf16.mxu0 0
    %225 = vmatpush1.bf16.msra.mxu0 %v205
    %226 = vmatprep.subr.bf16.mxu0 0
    %227 = vmatpush1.bf16.msra.mxu0 %v206
    %228 = vmatprep.subr.bf16.mxu0 0
    %229 = vmatpush1.bf16.msra.mxu0 %v207
    %230 = vmatprep.subr.bf16.mxu0 0
    %231 = vmatpush1.bf16.msra.mxu0 %v208
    %232 = vmatprep.subr.bf16.mxu0 0
    %233 = vmatpush1.bf16.msra.mxu0 %v209
    %234 = vmatprep.subr.bf16.mxu0 0
    %235 = vmatpush1.bf16.msra.mxu0 0
    %236 = vmatprep.subr.bf16.mxu0 0
    %237 = vmatpush1.bf16.msra.mxu0 0
    %238 = vmatprep.subr.bf16.mxu0 0
    %239 = vmatpush1.bf16.msra.mxu0 0
    %240 = vmatprep.subr.bf16.mxu0 0
    %241 = vmatpush1.bf16.msra.mxu0 0
    %242 = vmatprep.subr.bf16.mxu0 0
    %243 = vmatpush1.bf16.msra.mxu0 0
    %244 = vmatprep.subr.bf16.mxu0 0
    %245 = vmatpush1.bf16.msra.mxu0 0
    %246 = vmatprep.subr.bf16.mxu0 0
    %247 = vmatpush1.bf16.msra.mxu0 0
    %248 = vmatprep.subr.bf16.mxu0 0
    %249 = vmatpush1.bf16.msra.mxu0 0
    %250 = vmatprep.mubr.bf16.mxu0 0
    %251 = vmatmul.mubr.bf16.gmra.mrb[0].mxu0 %v146
    %v252 = vpop.f32.mrb[0].mxu0
    %v253 = vadd.f32 %v168, %v252
    %v254 = vpop.f32.mrb[0].mxu0
    %v255 = vpop.f32.mrb[0].mxu0
    %v256 = vpop.f32.mrb[0].mxu0
    %257 = vdwg.mxu0
    %v258 = vmax.f32 %v253, 0.0
    %259 = vst [vmem:[#allocation8] sm:$0xff] %v258
    // Predicated region
    $region34: #{tpu_custom_call.1} parent=1 // pred_check
      _
    $region35: #{tpu_custom_call.1} parent=1 // pred_check_branch
      %261 = sbr.rel (0) target = $region37
    $region36: #{tpu_custom_call.1} parent=1 // pred_region
      %s263 = ssub.s32 128, 128
      %264 = vsyncadd [#allocation4], %s263
      %s266 = sshll.u32 [#allocation8], 4
      %s267 = int_to_ptr.vmem [resolvable:$true] %s266
      %269 = dma.vmem_to_hbm [thread:$0]  %s267, 128, %s5, [#allocation4]
    $region37: #{tpu_custom_call.1} parent=1 // pred_fallthru
      _
    // Predicated region
    $region38: #{tpu_custom_call.1} parent=1 // pred_check
      _
    $region39: #{tpu_custom_call.1} parent=1 // pred_check_branch
      %271 = sbr.rel (0) target = $region41
    $region40: #{tpu_custom_call.1} parent=1 // pred_region
      %272 = dma.done [#allocation4], 128
    $region41: #{tpu_custom_call.1} parent=1 // pred_fallthru
      _
    %273 = vsyncpa [#allocation3], 1
    %274 = vsyncpa [#allocation6], 1
    %275 = vsyncpa [#allocation4], 1

</llo_original>
